<compile_context>
chip_gen: v7x
topology: tpu7x:2x2x1
jax: 0.10.0
libtpu: 0.0.40
codegen_flags: <defaults>
</compile_context>

<pallas_src>
import functools

import jax
import jax.numpy as jnp
from jax.experimental import pallas as pl
from jax.experimental.pallas import tpu as pltpu

LANES = 128
MAX_TILE_ROWS = 1024  # (1024, 128) f32 block = 512 KiB per input per buffer


def _bce_dice_kernel(x_ref, y_ref, out_ref, acc_ref, *, n_valid, rem_elems,
                     needs_mask, eps, lambda_dice, lambda_bce):
    i = pl.program_id(0)
    nsteps = pl.num_programs(0)

    @pl.when(i == 0)
    def _init():
        acc_ref[...] = jnp.zeros_like(acc_ref)

    def accumulate(x, y):
        # Shared transcendental: e = exp(-|x|) is used by both the sigmoid and
        # the numerically-stable BCE-with-logits log term.
        e = jnp.exp(-jnp.abs(x))
        inv = pl.reciprocal(1.0 + e, approx=True)        # EUP slot, ~free
        p = jnp.where(x >= 0.0, 1.0, e) * inv            # sigmoid(x)
        bce = jnp.maximum(x, 0.0) - x * y + jnp.log1p(e)

        r = x.shape[0]

        def fold(v):  # (r, 128) -> (8, 128) using only VPU adds (no XLU)
            return jnp.sum(v.reshape(r // 8, 8, LANES), axis=0)

        acc_ref[0] += fold(p * y)   # sum(sigmoid(x) * y)
        acc_ref[1] += fold(p)       # sum(sigmoid(x))
        acc_ref[2] += fold(y)       # sum(y)
        acc_ref[3] += fold(bce)     # sum(elementwise BCE-with-logits)

    if needs_mask:
        # Only the very last block can contain invalid (padded / out-of-bounds)
        # lanes, so every other grid step runs the mask-free fast path.
        @pl.when(i < nsteps - 1)
        def _full():
            accumulate(x_ref[...].astype(jnp.float32),
                       y_ref[...].astype(jnp.float32))

        @pl.when(i == nsteps - 1)
        def _ragged():
            x = x_ref[...].astype(jnp.float32)
            y = y_ref[...].astype(jnp.float32)
            r, c = x.shape
            row = jax.lax.broadcasted_iota(jnp.int32, (r, c), 0)
            col = jax.lax.broadcasted_iota(jnp.int32, (r, c), 1)
            valid = row * c + col < rem_elems  # block-local index: no i32 overflow
            # Clamp BEFORE the transcendentals so garbage lanes cannot become
            # Inf/NaN; x=-30, y=0 contributes ~1e-13 per lane (<< eps).
            x = jnp.where(valid, x, -30.0)
            y = jnp.where(valid, y, 0.0)
            accumulate(x, y)
    else:
        accumulate(x_ref[...].astype(jnp.float32),
                   y_ref[...].astype(jnp.float32))

    @pl.when(i == nsteps - 1)
    def _finalize():
        overlap_sum = jnp.sum(acc_ref[0])
        pred_sum = jnp.sum(acc_ref[1])
        targ_sum = jnp.sum(acc_ref[2])
        bce_sum = jnp.sum(acc_ref[3])
        dice_loss = 1.0 - (2.0 * overlap_sum + eps) / (pred_sum + targ_sum + eps)
        bce_mean = bce_sum / float(n_valid)
        out_ref[0, 0] = lambda_dice * dice_loss + lambda_bce * bce_mean


def bce_dice_loss(y_pr, y_gt, *, eps=1e-7, lambda_dice=1.0, lambda_bce=1.0):
    """BCEDiceLoss forward (sigmoid activation). Inputs: NCHW logits / targets."""
    assert y_pr.shape == y_gt.shape
    n_valid = int(y_pr.size)

    # Keep native dtypes (the kernel upcasts per tile); ravel is free for
    # contiguous tensors.
    x = jnp.ravel(y_pr)
    y = jnp.ravel(y_gt)

    # Pad only when the element count is not a multiple of one (8,128) tile.
    # Typical NCHW segmentation heads hit the no-pad path.
    pad = (-n_valid) % (8 * LANES)
    if pad:
        # TODO(synk): for huge ragged tensors this copy could be avoided with a
        # separate tail kernel; the common image-shaped case never takes it.
        x = jnp.pad(x, (0, pad))
        y = jnp.pad(y, (0, pad))

    rows = (n_valid + pad) // LANES          # multiple of 8
    tile_rows = min(MAX_TILE_ROWS, rows)
    grid_steps = pl.cdiv(rows, tile_rows)
    rem_elems = n_valid - (grid_steps - 1) * tile_rows * LANES
    needs_mask = rem_elems != tile_rows * LANES

    x2 = x.reshape(rows, LANES)
    y2 = y.reshape(rows, LANES)

    kernel = functools.partial(
        _bce_dice_kernel,
        n_valid=n_valid,
        rem_elems=int(rem_elems),
        needs_mask=bool(needs_mask),
        eps=float(eps),
        lambda_dice=float(lambda_dice),
        lambda_bce=float(lambda_bce),
    )

    out = pl.pallas_call(
        kernel,
        out_shape=jax.ShapeDtypeStruct((1, 1), jnp.float32),
        grid_spec=pltpu.PrefetchScalarGridSpec(
            num_scalar_prefetch=0,
            grid=(grid_steps,),
            in_specs=[
                pl.BlockSpec((tile_rows, LANES), lambda i: (i, 0)),
                pl.BlockSpec((tile_rows, LANES), lambda i: (i, 0)),
            ],
            out_specs=pl.BlockSpec(memory_space=pltpu.SMEM),
            scratch_shapes=[pltpu.VMEM((4, 8, LANES), jnp.float32)],
        ),
        compiler_params=pltpu.CompilerParams(
            dimension_semantics=("arbitrary",),   # shared accumulator: must stay serial
            vmem_limit_bytes=32 * 1024 * 1024,
        ),
    )(x2, y2)
    return out[0, 0]


def _reference(y_pr, y_gt, eps=1e-7, lambda_dice=1.0, lambda_bce=1.0):
    x = y_pr.astype(jnp.float32)
    y = y_gt.astype(jnp.float32)
    p = jax.nn.sigmoid(x)
    dice = 1.0 - (2.0 * jnp.sum(p * y) + eps) / (jnp.sum(p) + jnp.sum(y) + eps)
    bce = jnp.mean(jnp.maximum(x, 0.0) - x * y + jnp.log1p(jnp.exp(-jnp.abs(x))))
    return lambda_dice * dice + lambda_bce * bce


if __name__ == "__main__":
    key = jax.random.PRNGKey(0)
    k1, k2 = jax.random.split(key)

    # NCHW, matching the cloud-segmentation U-Net head: batch=2, 4 classes, 16x16
    y_pr = jax.random.normal(k1, (2, 4, 16, 16), dtype=jnp.float32)      # logits
    y_gt = (jax.random.uniform(k2, (2, 4, 16, 16)) > 0.5).astype(jnp.float32)

    # Targets are exactly 0/1, so shipping them as bf16 halves their HBM traffic
    # with no change in the result.
    loss = jax.block_until_ready(bce_dice_loss(y_pr, y_gt.astype(jnp.bfloat16)))
    ref = jax.block_until_ready(_reference(y_pr, y_gt))
    # Tolerance covers the approximate EUP reciprocal used inside the sigmoid.
    assert jnp.allclose(loss, ref, rtol=2e-3, atol=2e-3), (loss, ref)

    # Ragged-size case (element count not a multiple of 1024): exercises the
    # masked final-block path.
    k3, k4 = jax.random.split(k2)
    y_pr2 = jax.random.normal(k3, (2, 4, 15, 16), dtype=jnp.float32)
    y_gt2 = (jax.random.uniform(k4, (2, 4, 15, 16)) > 0.5).astype(jnp.float32)
    loss2 = jax.block_until_ready(bce_dice_loss(y_pr2, y_gt2))
    ref2 = jax.block_until_ready(_reference(y_pr2, y_gt2))
    assert jnp.allclose(loss2, ref2, rtol=2e-3, atol=2e-3), (loss2, ref2)

    print("KERNEL_OK")
</pallas_src>

<mosaic_0001>
module attributes {stable_mosaic.version = 11 : i64} {
  func.func @_bce_dice_kernel(%arg0: i32, %arg1: memref<16x128xf32, #tpu.memory_space<vmem>>, %arg2: memref<16x128xbf16, #tpu.memory_space<vmem>>, %arg3: memref<1x1xf32, #tpu.memory_space<smem>>, %arg4: memref<4x8x128xf32, #tpu.memory_space<vmem>>) attributes {dimension_semantics = [#tpu.dimension_semantics<arbitrary>], iteration_bounds = array<i64: 1>, scalar_prefetch = 0 : i64, scratch_operands = 1 : i64, tpu.core_type = #tpu.core_type<tc>, window_params = [{transform_indices = @transform_0, window_bounds = array<i64: 16, 128>}, {transform_indices = @transform_1, window_bounds = array<i64: 16, 128>}, {transform_indices = @transform_2, window_bounds = array<i64: 1, 1>}]} {
    %c0_i32 = arith.constant 0 : i32
    %0 = arith.cmpi eq, %arg0, %c0_i32 : i32
    %1 = arith.extui %0 : i1 to i32
    %c0_i32_0 = arith.constant 0 : i32
    %2 = arith.cmpi ne, %1, %c0_i32_0 : i32
    scf.if %2 {
      %cst_35 = arith.constant 0.000000e+00 : f32
      %60 = vector.broadcast %cst_35 : f32 to vector<4x8x128xf32>
      %c0_36 = arith.constant 0 : index
      %c0_37 = arith.constant 0 : index
      %c0_38 = arith.constant 0 : index
      %61 = vector.load %arg4[%c0_36, %c0_37, %c0_38] : memref<4x8x128xf32, #tpu.memory_space<vmem>>, vector<4x8x128xf32>
      tpu.vector_store %arg4[%c0_36, %c0_37, %c0_38], %60 {strides = array<i32>} : memref<4x8x128xf32, #tpu.memory_space<vmem>>, vector<4x8x128xf32>,
    } else {
    }
    %c0 = arith.constant 0 : index
    %c0_1 = arith.constant 0 : index
    %3 = vector.load %arg1[%c0, %c0_1] : memref<16x128xf32, #tpu.memory_space<vmem>>, vector<16x128xf32>
    %c0_2 = arith.constant 0 : index
    %c0_3 = arith.constant 0 : index
    %4 = vector.load %arg2[%c0_2, %c0_3] : memref<16x128xbf16, #tpu.memory_space<vmem>>, vector<16x128xbf16>
    %5 = arith.extf %4 : vector<16x128xbf16> to vector<16x128xf32>
    %6 = math.absf %3 : vector<16x128xf32>
    %cst = arith.constant 0.000000e+00 : f32
    %7 = vector.broadcast %cst : f32 to vector<16x128xf32>
    %8 = arith.subf %7, %6 : vector<16x128xf32>
    %9 = math.exp %8 : vector<16x128xf32>
    %cst_4 = arith.constant 1.000000e+00 : f32
    %10 = vector.broadcast %cst_4 : f32 to vector<16x128xf32>
    %11 = arith.addf %10, %9 : vector<16x128xf32>
    %12 = tpu.reciprocal %11 {approx = true} : vector<16x128xf32> -> vector<16x128xf32>
    %cst_5 = arith.constant 0.000000e+00 : f32
    %13 = vector.broadcast %cst_5 : f32 to vector<16x128xf32>
    %14 = arith.cmpf oge, %3, %13 : vector<16x128xf32>
    %cst_6 = arith.constant 1.000000e+00 : f32
    %15 = vector.broadcast %cst_6 : f32 to vector<16x128xf32>
    %16 = arith.select %14, %15, %9 : vector<16x128xi1>, vector<16x128xf32>
    %17 = arith.mulf %16, %12 : vector<16x128xf32>
    %cst_7 = arith.constant 0.000000e+00 : f32
    %18 = vector.broadcast %cst_7 : f32 to vector<16x128xf32>
    %19 = arith.maximumf %3, %18 : vector<16x128xf32>
    %20 = arith.mulf %3, %5 : vector<16x128xf32>
    %21 = arith.subf %19, %20 : vector<16x128xf32>
    %22 = math.log1p %9 : vector<16x128xf32>
    %23 = arith.addf %21, %22 : vector<16x128xf32>
    %c0_8 = arith.constant 0 : index
    %c0_9 = arith.constant 0 : index
    %c0_10 = arith.constant 0 : index
    %24 = vector.load %arg4[%c0_8, %c0_9, %c0_10] : memref<4x8x128xf32, #tpu.memory_space<vmem>>, vector<1x8x128xf32>
    %25 = vector.shape_cast %24 : vector<1x8x128xf32> to vector<8x128xf32>
    %26 = arith.mulf %17, %5 : vector<16x128xf32>
    %27 = vector.shape_cast %26 : vector<16x128xf32> to vector<2x8x128xf32>
    %cst_11 = arith.constant dense<0.000000e+00> : vector<8x128xf32>
    %28 = vector.multi_reduction <add>, %27, %cst_11 [0] : vector<2x8x128xf32> to vector<8x128xf32>
    %29 = arith.addf %25, %28 : vector<8x128xf32>
    %c0_12 = arith.constant 0 : index
    %c0_13 = arith.constant 0 : index
    %c0_14 = arith.constant 0 : index
    %30 = vector.load %arg4[%c0_12, %c0_13, %c0_14] : memref<4x8x128xf32, #tpu.memory_space<vmem>>, vector<1x8x128xf32>
    %31 = vector.shape_cast %30 : vector<1x8x128xf32> to vector<8x128xf32>
    %32 = vector.shape_cast %29 : vector<8x128xf32> to vector<1x8x128xf32>
    tpu.vector_store %arg4[%c0_12, %c0_13, %c0_14], %32 {strides = array<i32>} : memref<4x8x128xf32, #tpu.memory_space<vmem>>, vector<1x8x128xf32>,
    %c1 = arith.constant 1 : index
    %c0_15 = arith.constant 0 : index
    %c0_16 = arith.constant 0 : index
    %33 = vector.load %arg4[%c1, %c0_15, %c0_16] : memref<4x8x128xf32, #tpu.memory_space<vmem>>, vector<1x8x128xf32>
    %34 = vector.shape_cast %33 : vector<1x8x128xf32> to vector<8x128xf32>
    %35 = vector.shape_cast %17 : vector<16x128xf32> to vector<2x8x128xf32>
    %cst_17 = arith.constant dense<0.000000e+00> : vector<8x128xf32>
    %36 = vector.multi_reduction <add>, %35, %cst_17 [0] : vector<2x8x128xf32> to vector<8x128xf32>
    %37 = arith.addf %34, %36 : vector<8x128xf32>
    %c1_18 = arith.constant 1 : index
    %c0_19 = arith.constant 0 : index
    %c0_20 = arith.constant 0 : index
    %38 = vector.load %arg4[%c1_18, %c0_19, %c0_20] : memref<4x8x128xf32, #tpu.memory_space<vmem>>, vector<1x8x128xf32>
    %39 = vector.shape_cast %38 : vector<1x8x128xf32> to vector<8x128xf32>
    %40 = vector.shape_cast %37 : vector<8x128xf32> to vector<1x8x128xf32>
    tpu.vector_store %arg4[%c1_18, %c0_19, %c0_20], %40 {strides = array<i32>} : memref<4x8x128xf32, #tpu.memory_space<vmem>>, vector<1x8x128xf32>,
    %c2 = arith.constant 2 : index
    %c0_21 = arith.constant 0 : index
    %c0_22 = arith.constant 0 : index
    %41 = vector.load %arg4[%c2, %c0_21, %c0_22] : memref<4x8x128xf32, #tpu.memory_space<vmem>>, vector<1x8x128xf32>
    %42 = vector.shape_cast %41 : vector<1x8x128xf32> to vector<8x128xf32>
    %43 = vector.shape_cast %5 : vector<16x128xf32> to vector<2x8x128xf32>
    %cst_23 = arith.constant dense<0.000000e+00> : vector<8x128xf32>
    %44 = vector.multi_reduction <add>, %43, %cst_23 [0] : vector<2x8x128xf32> to vector<8x128xf32>
    %45 = arith.addf %42, %44 : vector<8x128xf32>
    %c2_24 = arith.constant 2 : index
    %c0_25 = arith.constant 0 : index
    %c0_26 = arith.constant 0 : index
    %46 = vector.load %arg4[%c2_24, %c0_25, %c0_26] : memref<4x8x128xf32, #tpu.memory_space<vmem>>, vector<1x8x128xf32>
    %47 = vector.shape_cast %46 : vector<1x8x128xf32> to vector<8x128xf32>
    %48 = vector.shape_cast %45 : vector<8x128xf32> to vector<1x8x128xf32>
    tpu.vector_store %arg4[%c2_24, %c0_25, %c0_26], %48 {strides = array<i32>} : memref<4x8x128xf32, #tpu.memory_space<vmem>>, vector<1x8x128xf32>,
    %c3 = arith.constant 3 : index
    %c0_27 = arith.constant 0 : index
    %c0_28 = arith.constant 0 : index
    %49 = vector.load %arg4[%c3, %c0_27, %c0_28] : memref<4x8x128xf32, #tpu.memory_space<vmem>>, vector<1x8x128xf32>
    %50 = vector.shape_cast %49 : vector<1x8x128xf32> to vector<8x128xf32>
    %51 = vector.shape_cast %23 : vector<16x128xf32> to vector<2x8x128xf32>
    %cst_29 = arith.constant dense<0.000000e+00> : vector<8x128xf32>
    %52 = vector.multi_reduction <add>, %51, %cst_29 [0] : vector<2x8x128xf32> to vector<8x128xf32>
    %53 = arith.addf %50, %52 : vector<8x128xf32>
    %c3_30 = arith.constant 3 : index
    %c0_31 = arith.constant 0 : index
    %c0_32 = arith.constant 0 : index
    %54 = vector.load %arg4[%c3_30, %c0_31, %c0_32] : memref<4x8x128xf32, #tpu.memory_space<vmem>>, vector<1x8x128xf32>
    %55 = vector.shape_cast %54 : vector<1x8x128xf32> to vector<8x128xf32>
    %56 = vector.shape_cast %53 : vector<8x128xf32> to vector<1x8x128xf32>
    tpu.vector_store %arg4[%c3_30, %c0_31, %c0_32], %56 {strides = array<i32>} : memref<4x8x128xf32, #tpu.memory_space<vmem>>, vector<1x8x128xf32>,
    %c0_i32_33 = arith.constant 0 : i32
    %57 = arith.cmpi eq, %arg0, %c0_i32_33 : i32
    %58 = arith.extui %57 : i1 to i32
    %c0_i32_34 = arith.constant 0 : i32
    %59 = arith.cmpi ne, %58, %c0_i32_34 : i32
    scf.if %59 {
      %c0_35 = arith.constant 0 : index
      %c0_36 = arith.constant 0 : index
      %c0_37 = arith.constant 0 : index
      %60 = vector.load %arg4[%c0_35, %c0_36, %c0_37] : memref<4x8x128xf32, #tpu.memory_space<vmem>>, vector<1x8x128xf32>
      %61 = vector.shape_cast %60 : vector<1x8x128xf32> to vector<8x128xf32>
      %62 = vector.shape_cast %61 : vector<8x128xf32> to vector<1x8x128xf32>
      %cst_38 = arith.constant dense<0.000000e+00> : vector<1xf32>
      %63 = vector.multi_reduction <add>, %62, %cst_38 [1, 2] : vector<1x8x128xf32> to vector<1xf32>
      %64 = vector.shape_cast %63 : vector<1xf32> to vector<1x1x1xf32>
      %65 = vector.extract %64[0, 0, 0] : f32 from vector<1x1x1xf32>
      %c1_39 = arith.constant 1 : index
      %c0_40 = arith.constant 0 : index
      %c0_41 = arith.constant 0 : index
      %66 = vector.load %arg4[%c1_39, %c0_40, %c0_41] : memref<4x8x128xf32, #tpu.memory_space<vmem>>, vector<1x8x128xf32>
      %67 = vector.shape_cast %66 : vector<1x8x128xf32> to vector<8x128xf32>
      %68 = vector.shape_cast %67 : vector<8x128xf32> to vector<1x8x128xf32>
      %cst_42 = arith.constant dense<0.000000e+00> : vector<1xf32>
      %69 = vector.multi_reduction <add>, %68, %cst_42 [1, 2] : vector<1x8x128xf32> to vector<1xf32>
      %70 = vector.shape_cast %69 : vector<1xf32> to vector<1x1x1xf32>
      %71 = vector.extract %70[0, 0, 0] : f32 from vector<1x1x1xf32>
      %c2_43 = arith.constant 2 : index
      %c0_44 = arith.constant 0 : index
      %c0_45 = arith.constant 0 : index
      %72 = vector.load %arg4[%c2_43, %c0_44, %c0_45] : memref<4x8x128xf32, #tpu.memory_space<vmem>>, vector<1x8x128xf32>
      %73 = vector.shape_cast %72 : vector<1x8x128xf32> to vector<8x128xf32>
      %74 = vector.shape_cast %73 : vector<8x128xf32> to vector<1x8x128xf32>
      %cst_46 = arith.constant dense<0.000000e+00> : vector<1xf32>
      %75 = vector.multi_reduction <add>, %74, %cst_46 [1, 2] : vector<1x8x128xf32> to vector<1xf32>
      %76 = vector.shape_cast %75 : vector<1xf32> to vector<1x1x1xf32>
      %77 = vector.extract %76[0, 0, 0] : f32 from vector<1x1x1xf32>
      %c3_47 = arith.constant 3 : index
      %c0_48 = arith.constant 0 : index
      %c0_49 = arith.constant 0 : index
      %78 = vector.load %arg4[%c3_47, %c0_48, %c0_49] : memref<4x8x128xf32, #tpu.memory_space<vmem>>, vector<1x8x128xf32>
      %79 = vector.shape_cast %78 : vector<1x8x128xf32> to vector<8x128xf32>
      %80 = vector.shape_cast %79 : vector<8x128xf32> to vector<1x8x128xf32>
      %cst_50 = arith.constant dense<0.000000e+00> : vector<1xf32>
      %81 = vector.multi_reduction <add>, %80, %cst_50 [1, 2] : vector<1x8x128xf32> to vector<1xf32>
      %82 = vector.shape_cast %81 : vector<1xf32> to vector<1x1x1xf32>
      %83 = vector.extract %82[0, 0, 0] : f32 from vector<1x1x1xf32>
      %cst_51 = arith.constant 2.000000e+00 : f32
      %84 = arith.mulf %cst_51, %65 : f32
      %cst_52 = arith.constant 1.000000e-07 : f32
      %85 = arith.addf %84, %cst_52 : f32
      %86 = arith.addf %71, %77 : f32
      %cst_53 = arith.constant 1.000000e-07 : f32
      %87 = arith.addf %86, %cst_53 : f32
      %88 = arith.divf %85, %87 : f32
      %cst_54 = arith.constant 1.000000e+00 : f32
      %89 = arith.subf %cst_54, %88 : f32
      %cst_55 = arith.constant 2.048000e+03 : f32
      %90 = arith.divf %83, %cst_55 : f32
      %cst_56 = arith.constant 1.000000e+00 : f32
      %91 = arith.mulf %cst_56, %89 : f32
      %cst_57 = arith.constant 1.000000e+00 : f32
      %92 = arith.mulf %cst_57, %90 : f32
      %93 = arith.addf %91, %92 : f32
      %c0_58 = arith.constant 0 : index
      %c0_59 = arith.constant 0 : index
      %94 = memref.load %arg3[%c0_58, %c0_59] : memref<1x1xf32, #tpu.memory_space<smem>>
      memref.store %93, %arg3[%c0_58, %c0_59] : memref<1x1xf32, #tpu.memory_space<smem>>
    } else {
    }
    return
  }
  func.func @transform_0(%arg0: i32) -> (i32, i32) {
    %c0_i32 = arith.constant 0 : i32
    %c0_i32_0 = arith.constant 0 : i32
    return %arg0, %c0_i32 : i32, i32
  }
  func.func @transform_1(%arg0: i32) -> (i32, i32) {
    %c0_i32 = arith.constant 0 : i32
    %c0_i32_0 = arith.constant 0 : i32
    return %arg0, %c0_i32 : i32, i32
  }
  func.func @transform_2(%arg0: i32) -> (i32, i32) {
    %c0_i32 = arith.constant 0 : i32
    %c0_i32_0 = arith.constant 0 : i32
    %c0_i32_1 = arith.constant 0 : i32
    return %c0_i32, %c0_i32_0 : i32, i32
  }
}

</mosaic_0001>

<llo_original>
// kernel: tpu_custom_call.1
$region0: #{tpu_custom_call.1}
  #allocation0 [shape = 'u32[]', space=smem, size = 0x4, offset = 0x4, fixed_abs, tag = 'smem constant byte address 0x4 - core index']
  #allocation1 [shape = 'u32[144,128]{1,0:T(1,128)}', space=vmem, size = 0x12000, scoped, tag = 'internal scratch']
  #allocation2 [shape = 'f32[4,8,128]{2,1,0:T(8,128)}', space=vmem, size = 0x4000, scoped, tag = 'scratch operand']
  %s0 = inlined_call_operand.hbm [shape: f32[16,128], index: 0, kind: input, shape index: {}]
  %s1 = inlined_call_operand.hbm [shape: bf16[16,128], index: 1, kind: input, shape index: {}]
  %s2 = inlined_call_operand.hbm [shape: f32[1,1], index: 2, kind: output, shape index: {}]
  %s3 = sld [smem:[#allocation0]]
  $region34: #{tpu_custom_call.1} parent=0
    _
  %s5 = ssub.s32 1, %s3
  %s6 = scalar_select 0, %s5, %s3
  $region1: #{tpu_custom_call.1} parent=0
    #allocation3 [shape = 'u8[8192]{0}', space=vmem, size = 0x2000, scoped, tag = 'input window, operand 0, single buffered']
    #allocation4 [shape = 's32[1]{0}', space=sflag, size = 0x4, scoped, tag = 'scoped memory for tpu_custom_call.1']
    #allocation5 [shape = 's32[1]{0}', space=sflag, size = 0x4, scoped, tag = 'scoped memory for tpu_custom_call.1']
    #allocation6 [shape = 'u8[4096]{0}', space=vmem, size = 0x1000, scoped, tag = 'input window, operand 1, single buffered']
    #allocation7 [shape = 's32[1]{0}', space=sflag, size = 0x4, scoped, tag = 'scoped memory for tpu_custom_call.1']
    #allocation8 [shape = 'u8[512]{0}', space=smem, size = 0x200, scoped, tag = 'output window, operand 0, single buffered']
    %7 = vsyncpa [#allocation4], 0
    %8 = vsyncpa [#allocation7], 0
    %9 = vsyncpa [#allocation5], 0
    // Predicated region
    $region2: #{tpu_custom_call.1} parent=1 // pred_check
      _
    $region3: #{tpu_custom_call.1} parent=1 // pred_check_branch
      %11 = sbr.rel (0) target = $region5
    $region4: #{tpu_custom_call.1} parent=1 // pred_region
      %s13 = ssub.s32 256, 256
      %14 = vsyncadd [#allocation4], %s13
      %s15 = sshll.u32 [#allocation3], 4
      %s16 = int_to_ptr.vmem [resolvable:$true] %s15
      %21 = dma.hbm_to_vmem [thread:$0]  %s0, 256, %s16, [#allocation4], 128, 128, 8
    $region5: #{tpu_custom_call.1} parent=1 // pred_fallthru
      _
    // Predicated region
    $region6: #{tpu_custom_call.1} parent=1 // pred_check
      _
    $region7: #{tpu_custom_call.1} parent=1 // pred_check_branch
      %23 = sbr.rel (0) target = $region9
    $region8: #{tpu_custom_call.1} parent=1 // pred_region
      %s25 = ssub.s32 128, 128
      %26 = vsyncadd [#allocation7], %s25
      %s27 = sshll.u32 [#allocation6], 4
      %s28 = int_to_ptr.vmem [resolvable:$true] %s27
      %33 = dma.hbm_to_vmem [thread:$0]  %s1, 128, %s28, [#allocation7], 64, 64, 4
    $region9: #{tpu_custom_call.1} parent=1 // pred_fallthru
      _
    // Predicated region
    $region10: #{tpu_custom_call.1} parent=1 // pred_check
      _
    $region11: #{tpu_custom_call.1} parent=1 // pred_check_branch
      %35 = sbr.rel (0) target = $region13
    $region12: #{tpu_custom_call.1} parent=1 // pred_region
      %36 = dma.done [#allocation4], 256
    $region13: #{tpu_custom_call.1} parent=1 // pred_fallthru
      _
    // Predicated region
    $region14: #{tpu_custom_call.1} parent=1 // pred_check
      _
    $region15: #{tpu_custom_call.1} parent=1 // pred_check_branch
      %38 = sbr.rel (0) target = $region17
    $region16: #{tpu_custom_call.1} parent=1 // pred_region
      %39 = dma.done [#allocation7], 128
    $region17: #{tpu_custom_call.1} parent=1 // pred_fallthru
      _
    %p40 = scmp.eq.s32.totalorder 0, 0
    // Predicated region
    $region18: #{tpu_custom_call.1} parent=1 // pred_check
      %p41 = pneg %p40
    $region19: #{tpu_custom_call.1} parent=1 // pred_check_branch
      %43 = sbr.rel (%p41) target = $region21
    $region20: #{tpu_custom_call.1} parent=1 // pred_region
      %44 = vst [vmem:[#allocation2] sm:$0xff] 0.0
      %45 = vst [vmem:[#allocation2 + $0x8] sm:$0xff] 0.0
      %46 = vst [vmem:[#allocation2 + $0x10] sm:$0xff] 0.0
      %47 = vst [vmem:[#allocation2 + $0x18] sm:$0xff] 0.0
    $region21: #{tpu_custom_call.1} parent=1 // pred_fallthru
      _
    %v48 = vld [vmem:[#allocation3] sm:$0xff]
    %v49 = vld [vmem:[#allocation3 + $0x8] sm:$0xff]
    %v50 = vld [vmem:[#allocation6] sm:$0xf]
    %v51 = vld [vmem:[#allocation6 + $0x4] sm:$0xf]
    %v52 = vunpack.c.l.bf16 %v50
    %v53 = vunpack.c.l.bf16 %v51
    %v54 = vand.u32 2147483647, %v48
    %v55 = vand.u32 2147483647, %v49
    %v56 = vsub.f32 0.0, %v54
    %v57 = vsub.f32 0.0, %v55
    %v58 = vmul.f32 %v56, 1.442695
    %v59 = vpow.pop %v58
    %v60 = vmul.f32 %v57, 1.442695
    %v61 = vpow.pop %v60
    %v62 = vadd.f32 %v59, 1.0
    %v63 = vadd.f32 %v61, 1.0
    %v64 = vrcp.pop %v62
    %v65 = vrcp.pop %v63
    %vm66 = vcmp.ge.f32.partialorder %v48, 0.0
    %vm67 = vcmp.ge.f32.partialorder %v49, 0.0
    %v68 = vsel %vm66, 1.0, %v59
    %v69 = vsel %vm67, 1.0, %v61
    %v70 = vmul.f32 %v68, %v64
    %v71 = vmul.f32 %v69, %v65
    %v72 = vmax.f32 %v48, 0.0
    %v73 = vmax.f32 %v49, 0.0
    %v74 = vmul.f32 %v48, %v52
    %v75 = vmul.f32 %v49, %v53
    %v76 = vsub.f32 %v72, %v74
    %v77 = vsub.f32 %v73, %v75
    %v78 = vadd.f32 %v59, 1.0
    %v79 = vlog2.pop %v78
    %v80 = vmul.f32 %v79, 0.6931472
    %v81 = vmul.f32 -0.5, %v59
    %v82 = vadd.f32 %v81, 1.0
    %v83 = vmul.f32 %v82, %v59
    %v84 = vand.u32 2147483647, %v59
    %vm85 = vcmp.lt.f32.partialorder %v84, 0.0004427343
    %v86 = vsel %vm85, %v83, %v80
    %v87 = vadd.f32 %v61, 1.0
    %v88 = vlog2.pop %v87
    %v89 = vmul.f32 %v88, 0.6931472
    %v90 = vmul.f32 -0.5, %v61
    %v91 = vadd.f32 %v90, 1.0
    %v92 = vmul.f32 %v91, %v61
    %v93 = vand.u32 2147483647, %v61
    %vm94 = vcmp.lt.f32.partialorder %v93, 0.0004427343
    %v95 = vsel %vm94, %v92, %v89
    %v96 = vadd.f32 %v76, %v86
    %v97 = vadd.f32 %v77, %v95
    %v98 = vld [vmem:[#allocation2] sm:$0xff]
    %v99 = vmul.f32 %v70, %v52
    %v100 = vmul.f32 %v71, %v53
    %v101 = vadd.f32 %v99, %v100
    %v102 = vadd.f32 %v98, %v101
    %103 = vst [vmem:[#allocation2] sm:$0xff] %v102
    %s104 = scalar_lea.vmem [#allocation2], 8
    %v105 = vld [vmem:[%s104] sm:$0xff]
    %v106 = vadd.f32 %v70, %v71
    %v107 = vadd.f32 %v105, %v106
    %108 = vst [vmem:[%s104] sm:$0xff] %v107
    %s109 = scalar_lea.vmem [#allocation2], 16
    %v110 = vld [vmem:[%s109] sm:$0xff]
    %v111 = vadd.f32 %v52, %v53
    %v112 = vadd.f32 %v110, %v111
    %113 = vst [vmem:[%s109] sm:$0xff] %v112
    %s114 = scalar_lea.vmem [#allocation2], 24
    %v115 = vld [vmem:[%s114] sm:$0xff]
    %v116 = vadd.f32 %v96, %v97
    %v117 = vadd.f32 %v115, %v116
    %118 = vst [vmem:[%s114] sm:$0xff] %v117
    // Predicated region
    $region22: #{tpu_custom_call.1} parent=1 // pred_check
      %p119 = pneg %p40
    $region23: #{tpu_custom_call.1} parent=1 // pred_check_branch
      %121 = sbr.rel (%p119) target = $region25
    $region24: #{tpu_custom_call.1} parent=1 // pred_region
      %v122 = vld [vmem:[#allocation2] sm:$0xff]
      %123 = vadd.xlane.f32.xlu0 %v122
      %v124 = vpop.xlane.xlu0 %123
      %v125 = vrot.slane %v124, 4
      %v126 = vadd.f32 %v124, %v125
      %v127 = vrot.slane %v126, 2
      %v128 = vadd.f32 %v126, %v127
      %v129 = vrot.slane %v128, 1
      %v130 = vadd.f32 %v128, %v129
      %s131 = vtos %v130
      %v132 = vld [vmem:[%s104] sm:$0xff]
      %133 = vadd.xlane.f32.xlu0 %v132
      %v134 = vpop.xlane.xlu0 %133
      %v135 = vrot.slane %v134, 4
      %v136 = vadd.f32 %v134, %v135
      %v137 = vrot.slane %v136, 2
      %v138 = vadd.f32 %v136, %v137
      %v139 = vrot.slane %v138, 1
      %v140 = vadd.f32 %v138, %v139
      %s141 = vtos %v140
      %v142 = vld [vmem:[%s109] sm:$0xff]
      %143 = vadd.xlane.f32.xlu0 %v142
      %v144 = vpop.xlane.xlu0 %143
      %v145 = vrot.slane %v144, 4
      %v146 = vadd.f32 %v144, %v145
      %v147 = vrot.slane %v146, 2
      %v148 = vadd.f32 %v146, %v147
      %v149 = vrot.slane %v148, 1
      %v150 = vadd.f32 %v148, %v149
      %s151 = vtos %v150
      %v152 = vld [vmem:[%s114] sm:$0xff]
      %153 = vadd.xlane.f32.xlu0 %v152
      %v154 = vpop.xlane.xlu0 %153
      %v155 = vrot.slane %v154, 4
      %v156 = vadd.f32 %v154, %v155
      %v157 = vrot.slane %v156, 2
      %v158 = vadd.f32 %v156, %v157
      %v159 = vrot.slane %v158, 1
      %v160 = vadd.f32 %v158, %v159
      %s161 = vtos %v160
      %s162 = smul.f32 %s131, 2.0
      %s163 = sadd.f32 %s162, 1e-07
      %s164 = sadd.f32 %s141, %s151
      %s165 = sadd.f32 %s164, 1e-07
      %v166 = vstv %s165
      %v167 = vrcp.pop %v166
      %s168 = vtos %v167
      %s169 = smul.f32 %s163, %s168
      %s170 = ssub.f32 1.0, %s169
      %v171 = vrcp.pop 2048.0
      %s172 = vtos %v171
      %s173 = smul.f32 %s161, %s172
      %s174 = sadd.f32 %s170, %s173
      %s175 = scalar_lea.smem [#allocation8], 0
      %176 = sst [smem:[%s175]] %s174
    $region25: #{tpu_custom_call.1} parent=1 // pred_fallthru
      _
    // Predicated region
    $region26: #{tpu_custom_call.1} parent=1 // pred_check
      _
    $region27: #{tpu_custom_call.1} parent=1 // pred_check_branch
      %178 = sbr.rel (0) target = $region29
    $region28: #{tpu_custom_call.1} parent=1 // pred_region
      %s180 = ssub.s32 16, 16
      %181 = vsyncadd [#allocation5], %s180
      %184 = dma.smem_to_hbm [#allocation8], 16, %s2, [#allocation5]
    $region29: #{tpu_custom_call.1} parent=1 // pred_fallthru
      _
    // Predicated region
    $region30: #{tpu_custom_call.1} parent=1 // pred_check
      _
    $region31: #{tpu_custom_call.1} parent=1 // pred_check_branch
      %186 = sbr.rel (0) target = $region33
    $region32: #{tpu_custom_call.1} parent=1 // pred_region
      %187 = dma.done [#allocation5], 16
    $region33: #{tpu_custom_call.1} parent=1 // pred_fallthru
      _
    %188 = sfence
    %189 = vsyncpa [#allocation4], 1
    %190 = vsyncpa [#allocation7], 1
    %191 = vsyncpa [#allocation5], 1

</llo_original>
